<compile_context>
chip_gen: v6e
topology: v6e:2x2x1
jax: 0.10.0
libtpu: 0.0.40
codegen_flags: <defaults>
</compile_context>

<pallas_src>
import jax
import jax.numpy as jnp
from jax.experimental import pallas as pl
from jax.experimental.pallas import tpu as pltpu


def _siglin_kernel(a_ref, z_ref, o_ref):
    z = z_ref[...]
    a = a_ref[0]                      # scalar coefficient from SMEM
    # Fused logistic keeps the transcendental on the EUP slot; the add/mul of
    # the linear term runs on the VPU.  Only 1 transcendental per element, so
    # the kernel stays HBM-bound on every generation (incl. v7x @ 3.2 TB/s).
    sig = jax.nn.sigmoid(z)
    o_ref[...] = (sig + a * z).astype(o_ref.dtype)


def siglin(x: jax.Array, a: float = 0.2, *, lanes: int = 512,
           block_rows: int = 1024) -> jax.Array:
    """Elementwise SigLin over an array of any shape (matches torch semantics)."""
    orig_shape = x.shape
    dtype = x.dtype
    n = x.size

    a_arr = jnp.full((1,), a, dtype=jnp.float32)

    flat = jnp.ravel(x)
    rem = n % lanes
    if rem:
        # Minimal pad (at most lanes-1 elements) just so the flat array
        # reshapes into a lane-dense slab.  Skipped entirely when n is already
        # a multiple of the lane width (the common case for NN activations).
        flat = jnp.pad(flat, (0, lanes - rem))
    rows = flat.size // lanes
    z2d = flat.reshape(rows, lanes)

    # Block rows: either the full row extent (always a legal block shape) or a
    # large multiple of 8 -> ~2 MiB f32 blocks.  Partial trailing blocks are
    # masked by Pallas (grid uses cdiv).
    br = rows if rows < block_rows else block_rows
    grid = (pl.cdiv(rows, br),)

    out = pl.pallas_call(
        _siglin_kernel,
        out_shape=jax.ShapeDtypeStruct((rows, lanes), dtype),
        grid=grid,
        in_specs=[
            pl.BlockSpec(memory_space=pltpu.MemorySpace.SMEM),   # scalar `a`
            pl.BlockSpec((br, lanes), lambda i: (i, 0)),
        ],
        out_specs=pl.BlockSpec((br, lanes), lambda i: (i, 0)),
        compiler_params=pltpu.CompilerParams(
            dimension_semantics=("parallel",),
        ),
    )(a_arr, z2d)

    if rem:
        out = out.reshape(-1)[:n]
    return out.reshape(orig_shape)


def siglin_ref(x: jax.Array, a: float = 0.2) -> jax.Array:
    return jax.nn.sigmoid(x) + a * x


if __name__ == "__main__":
    key = jax.random.PRNGKey(0)
    # Small NCHW-style input consistent with the module's (*) shape contract.
    x = jax.random.normal(key, (2, 4, 16, 16), dtype=jnp.float32)

    y = siglin(x, a=0.2)
    jax.block_until_ready(y)

    y_ref = siglin_ref(x, a=0.2)
    assert y.shape == x.shape and y.dtype == x.dtype
    assert jnp.allclose(y, y_ref, atol=1e-5, rtol=1e-5)

    print("KERNEL_OK")
</pallas_src>

<mosaic_0001>
module attributes {stable_mosaic.version = 11 : i64} {
  func.func @_siglin_kernel(%arg0: i32, %arg1: memref<1xf32, #tpu.memory_space<smem>>, %arg2: memref<4x512xf32, #tpu.memory_space<vmem>>, %arg3: memref<4x512xf32, #tpu.memory_space<vmem>>) attributes {dimension_semantics = [#tpu.dimension_semantics<parallel>], iteration_bounds = array<i64: 1>, scalar_prefetch = 0 : i64, scratch_operands = 0 : i64, tpu.core_type = #tpu.core_type<tc>, window_params = [{transform_indices = @transform_0, window_bounds = array<i64: 1>}, {transform_indices = @transform_1, window_bounds = array<i64: 4, 512>}, {transform_indices = @transform_2, window_bounds = array<i64: 4, 512>}]} {
    %c0 = arith.constant 0 : index
    %c0_0 = arith.constant 0 : index
    %0 = vector.load %arg2[%c0, %c0_0] : memref<4x512xf32, #tpu.memory_space<vmem>>, vector<4x512xf32>
    %c0_1 = arith.constant 0 : index
    %1 = memref.load %arg1[%c0_1] : memref<1xf32, #tpu.memory_space<smem>>
    %2 = arith.negf %0 : vector<4x512xf32>
    %3 = math.exp %2 : vector<4x512xf32>
    %cst = arith.constant 1.000000e+00 : f32
    %4 = vector.broadcast %cst : f32 to vector<4x512xf32>
    %5 = arith.addf %4, %3 : vector<4x512xf32>
    %6 = arith.divf %4, %5 : vector<4x512xf32>
    %7 = vector.broadcast %1 : f32 to vector<4x512xf32>
    %8 = arith.mulf %7, %0 : vector<4x512xf32>
    %9 = arith.addf %6, %8 : vector<4x512xf32>
    %c0_2 = arith.constant 0 : index
    %c0_3 = arith.constant 0 : index
    %10 = vector.load %arg3[%c0_2, %c0_3] : memref<4x512xf32, #tpu.memory_space<vmem>>, vector<4x512xf32>
    tpu.vector_store %arg3[%c0_2, %c0_3], %9 {strides = array<i32>} : memref<4x512xf32, #tpu.memory_space<vmem>>, vector<4x512xf32>,
    return
  }
  func.func @transform_0(%arg0: i32) -> i32 {
    %c0_i32 = arith.constant 0 : i32
    %c0_i32_0 = arith.constant 0 : i32
    return %c0_i32 : i32
  }
  func.func @transform_1(%arg0: i32) -> (i32, i32) {
    %c0_i32 = arith.constant 0 : i32
    %c0_i32_0 = arith.constant 0 : i32
    return %arg0, %c0_i32 : i32, i32
  }
  func.func @transform_2(%arg0: i32) -> (i32, i32) {
    %c0_i32 = arith.constant 0 : i32
    %c0_i32_0 = arith.constant 0 : i32
    return %arg0, %c0_i32 : i32, i32
  }
}

</mosaic_0001>

<llo_original>
// kernel: tpu_custom_call.1
$region0: #{tpu_custom_call.1}
  #allocation0 [shape = 'u32[]', space=smem, size = 0x4, offset = 0x4, fixed_abs, tag = 'smem constant byte address 0x4 - core index']
  #allocation1 [shape = 'u32[144,128]{1,0:T(1,128)}', space=vmem, size = 0x12000, scoped, tag = 'internal scratch']
  #allocation2 [shape = 'f32[1]{0:T(128)S(6)}', space=smem, size = 0x200, scoped, tag = 'scoped memory for tpu_custom_call.1']
  %s0 = inlined_call_operand.<no memory space> [shape: f32[1], index: 0, kind: input, shape index: {}]
  %s1 = inlined_call_operand.hbm [shape: f32[4,512], index: 1, kind: input, shape index: {}]
  %s2 = inlined_call_operand.hbm [shape: f32[4,512], index: 2, kind: output, shape index: {}]
  %s3 = sld [smem:[#allocation0]]
  $region22: #{tpu_custom_call.1} parent=0
    _
  %s5 = ssub.s32 1, %s3
  %s6 = scalar_select 0, %s5, %s3
  %7 = sst [smem:[#allocation2]] %s0
  $region1: #{tpu_custom_call.1} parent=0
    #allocation3 [shape = 'u8[8192]{0}', space=vmem, size = 0x2000, scoped, tag = 'input window, operand 1, single buffered']
    #allocation4 [shape = 's32[1]{0}', space=sflag, size = 0x4, scoped, tag = 'scoped memory for tpu_custom_call.1']
    #allocation5 [shape = 's32[1]{0}', space=sflag, size = 0x4, scoped, tag = 'scoped memory for tpu_custom_call.1']
    #allocation6 [shape = 'u8[8192]{0}', space=vmem, size = 0x2000, scoped, tag = 'output window, operand 0, single buffered']
    %8 = vsyncpa [#allocation4], 0
    %9 = vsyncpa [#allocation5], 0
    // Predicated region
    $region2: #{tpu_custom_call.1} parent=1 // pred_check
      _
    $region3: #{tpu_custom_call.1} parent=1 // pred_check_branch
      %11 = sbr.rel (0) target = $region5
    $region4: #{tpu_custom_call.1} parent=1 // pred_region
      _
    $region5: #{tpu_custom_call.1} parent=1 // pred_fallthru
      _
    // Predicated region
    $region6: #{tpu_custom_call.1} parent=1 // pred_check
      _
    $region7: #{tpu_custom_call.1} parent=1 // pred_check_branch
      %13 = sbr.rel (0) target = $region9
    $region8: #{tpu_custom_call.1} parent=1 // pred_region
      %s15 = ssub.s32 256, 256
      %16 = vsyncadd [#allocation4], %s15
      %s18 = sshll.u32 [#allocation3], 4
      %s19 = int_to_ptr.vmem [resolvable:$true] %s18
      %21 = dma.hbm_to_vmem [thread:$0]  %s1, 256, %s19, [#allocation4]
    $region9: #{tpu_custom_call.1} parent=1 // pred_fallthru
      _
    // Predicated region
    $region10: #{tpu_custom_call.1} parent=1 // pred_check
      _
    $region11: #{tpu_custom_call.1} parent=1 // pred_check_branch
      %23 = sbr.rel (0) target = $region13
    $region12: #{tpu_custom_call.1} parent=1 // pred_region
      %24 = dma.done [#allocation4], 256
    $region13: #{tpu_custom_call.1} parent=1 // pred_fallthru
      _
    %v25 = vld [vmem:[#allocation3] sm:$0xff]
    %v26 = vld [vmem:[#allocation3 + $0x8] sm:$0xff]
    %s27 = sld [smem:[#allocation2]]
    %v28 = vxor.u32 %v25, 2147483648
    %v29 = vxor.u32 %v26, 2147483648
    %v30 = vmul.f32 %v28, 1.442695
    %v31 = vpow.pop %v30
    %v32 = vmul.f32 %v29, 1.442695
    %v33 = vpow.pop %v32
    %v34 = vadd.f32 %v31, 1.0
    %v35 = vadd.f32 %v33, 1.0
    %v36 = vrcp.pop %v34
    %v37 = vmul.f32 1.0, %v36
    %v38 = vrcp.pop %v35
    %v39 = vmul.f32 1.0, %v38
    %v40 = vstv %s27
    %v41 = vmul.f32 %v40, %v25
    %v42 = vmul.f32 %v40, %v26
    %v43 = vadd.f32 %v37, %v41
    %v44 = vadd.f32 %v39, %v42
    %45 = vst [vmem:[#allocation6] sm:$0xff] %v43
    %46 = vst [vmem:[#allocation6 + $0x8] sm:$0xff] %v44
    // Predicated region
    $region14: #{tpu_custom_call.1} parent=1 // pred_check
      _
    $region15: #{tpu_custom_call.1} parent=1 // pred_check_branch
      %48 = sbr.rel (0) target = $region17
    $region16: #{tpu_custom_call.1} parent=1 // pred_region
      %s50 = ssub.s32 256, 256
      %51 = vsyncadd [#allocation5], %s50
      %s53 = sshll.u32 [#allocation6], 4
      %s54 = int_to_ptr.vmem [resolvable:$true] %s53
      %56 = dma.vmem_to_hbm [thread:$0]  %s54, 256, %s2, [#allocation5]
    $region17: #{tpu_custom_call.1} parent=1 // pred_fallthru
      _
    // Predicated region
    $region18: #{tpu_custom_call.1} parent=1 // pred_check
      _
    $region19: #{tpu_custom_call.1} parent=1 // pred_check_branch
      %58 = sbr.rel (0) target = $region21
    $region20: #{tpu_custom_call.1} parent=1 // pred_region
      %59 = dma.done [#allocation5], 256
    $region21: #{tpu_custom_call.1} parent=1 // pred_fallthru
      _
    %60 = vsyncpa [#allocation4], 1
    %61 = vsyncpa [#allocation5], 1

</llo_original>
